<compile_context>
chip_gen: v7x
topology: tpu7x:2x2x1
jax: 0.10.0
libtpu: 0.0.40
codegen_flags: <defaults>
</compile_context>

<pallas_src>
import jax
import jax.numpy as jnp
from jax.experimental import pallas as pl
from jax.experimental.pallas import tpu as pltpu


# ---------------------------------------------------------------------------
# Kernel: fused embedding lookup  out[b, :] = table[idx[b], :]
# ---------------------------------------------------------------------------
def _embedding_kernel(idx_ref, table_ref, o_ref):
    # idx_ref  : SMEM [B]   int32
    # table_ref: VMEM [N,D] float32
    # o_ref    : VMEM [B,D] float32
    n_rows = table_ref.shape[0]
    batch = o_ref.shape[0]
    for b in range(batch):                       # tiny static unroll (B ~ 2)
        idx_b = idx_ref[b]                       # scalar read from SMEM
        # Clamp so a bad id never becomes an unchecked OOB VMEM read
        # (PyTorch would raise; we pin to a valid row instead of silent junk).
        idx_b = jnp.clip(idx_b, 0, n_rows - 1)
        o_ref[pl.ds(b, 1), :] = table_ref[pl.ds(idx_b, 1), :]


def _embedding_lookup_flat(idx_flat, table):
    """idx_flat: int32 [B]; table: [n_domains, domain_dim] float32."""
    B = idx_flat.shape[0]
    N, D = table.shape
    return pl.pallas_call(
        _embedding_kernel,
        out_shape=jax.ShapeDtypeStruct((B, D), table.dtype),
        # No grid: single invocation, full-array blocks, one DMA in / one out.
        in_specs=[
            pl.BlockSpec(memory_space=pltpu.MemorySpace.SMEM),   # ids (scalars)
            pl.BlockSpec(memory_space=pltpu.MemorySpace.VMEM),   # table
        ],
        out_specs=pl.BlockSpec(memory_space=pltpu.MemorySpace.VMEM),
    )(idx_flat, table)


@jax.jit
def embedding_lookup(indices, table):
    """indices: int array of any shape; table: [n_domains, domain_dim]."""
    D = table.shape[1]
    if indices.size == 0:                        # static-shape guard (B == 0)
        return jnp.zeros(indices.shape + (D,), table.dtype)
    idx_flat = indices.astype(jnp.int32).reshape(-1)
    out = _embedding_lookup_flat(idx_flat, table)
    return out.reshape(indices.shape + (D,))


# ---------------------------------------------------------------------------
# Module wrapper: mirror of DomainEmbedding
# ---------------------------------------------------------------------------
class DomainEmbeddingPallas:
    """forward(batch) -> {'domain-feature': embedding(batch['domains'])}"""

    def __init__(self, n_domains, domain_dim, key):
        # nn.Embedding default init: weight ~ N(0, 1), float32.
        self.weight = jax.random.normal(
            key, (n_domains, domain_dim), jnp.float32)
        self.output_dim = domain_dim

    def forward(self, batch):
        return {"domain-feature": embedding_lookup(batch["domains"], self.weight)}

    def get_output_dim(self):
        return self.output_dim


if __name__ == "__main__":
    key = jax.random.PRNGKey(0)
    k_emb, k_idx = jax.random.split(key)

    n_domains, domain_dim = 8, 32
    B = 2

    model = DomainEmbeddingPallas(n_domains, domain_dim, k_emb)
    domains = jax.random.randint(k_idx, (B,), 0, n_domains, dtype=jnp.int32)
    batch = {"domains": domains}

    out = model.forward(batch)
    feat = jax.block_until_ready(out["domain-feature"])

    assert feat.shape == (B, domain_dim), feat.shape
    assert feat.dtype == jnp.float32
    # Correctness vs the pure-JAX reference gather.
    ref = jnp.take(model.weight, domains, axis=0)
    assert jnp.allclose(feat, ref, atol=1e-6, rtol=1e-6), "mismatch vs reference"
    assert model.get_output_dim() == domain_dim
    print("KERNEL_OK")
</pallas_src>

<mosaic_0001>
module attributes {stable_mosaic.version = 11 : i64} {
  func.func @_embedding_kernel(%arg0: memref<2xi32, #tpu.memory_space<smem>>, %arg1: memref<8x32xf32, #tpu.memory_space<vmem>>, %arg2: memref<2x32xf32, #tpu.memory_space<vmem>>) attributes {dimension_semantics = [], scalar_prefetch = 0 : i64, scratch_operands = 0 : i64, tpu.core_type = #tpu.core_type<tc>} {
    %c0 = arith.constant 0 : index
    %0 = memref.load %arg0[%c0] : memref<2xi32, #tpu.memory_space<smem>>
    %c0_i32 = arith.constant 0 : i32
    %c7_i32 = arith.constant 7 : i32
    %1 = arith.maxsi %c0_i32, %0 : i32
    %2 = arith.minsi %c7_i32, %1 : i32
    %3 = arith.index_cast %2 : i32 to index
    %c0_0 = arith.constant 0 : index
    %4 = vector.load %arg1[%3, %c0_0] : memref<8x32xf32, #tpu.memory_space<vmem>>, vector<1x32xf32>
    %c0_1 = arith.constant 0 : index
    %c0_2 = arith.constant 0 : index
    %5 = vector.load %arg2[%c0_1, %c0_2] : memref<2x32xf32, #tpu.memory_space<vmem>>, vector<1x32xf32>
    tpu.vector_store %arg2[%c0_1, %c0_2], %4 {strides = array<i32>} : memref<2x32xf32, #tpu.memory_space<vmem>>, vector<1x32xf32>,
    %c1 = arith.constant 1 : index
    %6 = memref.load %arg0[%c1] : memref<2xi32, #tpu.memory_space<smem>>
    %c0_i32_3 = arith.constant 0 : i32
    %c7_i32_4 = arith.constant 7 : i32
    %7 = arith.maxsi %c0_i32_3, %6 : i32
    %8 = arith.minsi %c7_i32_4, %7 : i32
    %9 = arith.index_cast %8 : i32 to index
    %c0_5 = arith.constant 0 : index
    %10 = vector.load %arg1[%9, %c0_5] : memref<8x32xf32, #tpu.memory_space<vmem>>, vector<1x32xf32>
    %c1_6 = arith.constant 1 : index
    %c0_7 = arith.constant 0 : index
    %11 = vector.load %arg2[%c1_6, %c0_7] : memref<2x32xf32, #tpu.memory_space<vmem>>, vector<1x32xf32>
    tpu.vector_store %arg2[%c1_6, %c0_7], %10 {strides = array<i32>} : memref<2x32xf32, #tpu.memory_space<vmem>>, vector<1x32xf32>,
    return
  }
}

</mosaic_0001>

<llo_original>
// kernel: embedding_lookup.1
$region0: #{embedding_lookup.1}
  #allocation0 [shape = 'u32[]', space=smem, size = 0x4, offset = 0x4, fixed_abs, tag = 'smem constant byte address 0x4 - core index']
  #allocation1 [shape = 'u32[144,128]{1,0:T(1,128)}', space=vmem, size = 0x12000, scoped, tag = 'internal scratch']
  %s0 = inlined_call_operand.hbm [shape: s32[2], index: 0, kind: input, shape index: {}]
  %s1 = inlined_call_operand.hbm [shape: f32[8,32], index: 1, kind: input, shape index: {}]
  %s2 = inlined_call_operand.hbm [shape: f32[2,32], index: 2, kind: output, shape index: {}]
  %s3 = sld [smem:[#allocation0]]
  $region26: #{embedding_lookup.1} parent=0
    _
  %s5 = ssub.s32 1, %s3
  %s6 = scalar_select 0, %s5, %s3
  $region1: #{embedding_lookup.1} parent=0
    #allocation2 [shape = 'u8[512]{0}', space=smem, size = 0x200, scoped, tag = 'input window, operand 0, single buffered']
    #allocation3 [shape = 's32[1]{0}', space=sflag, size = 0x4, scoped, tag = 'scoped memory for embedding_lookup.1']
    #allocation4 [shape = 's32[1]{0}', space=sflag, size = 0x4, scoped, tag = 'scoped memory for embedding_lookup.1']
    #allocation5 [shape = 's32[1]{0}', space=sflag, size = 0x4, scoped, tag = 'scoped memory for embedding_lookup.1']
    #allocation6 [shape = 'u8[4096]{0}', space=vmem, size = 0x1000, scoped, tag = 'input window, operand 1, single buffered']
    #allocation7 [shape = 'u8[1024]{0}', space=vmem, size = 0x400, scoped, tag = 'output window, operand 0, single buffered']
    %7 = vsyncpa [#allocation5], 0
    %8 = vsyncpa [#allocation3], 0
    %9 = vsyncpa [#allocation4], 0
    // Predicated region
    $region2: #{embedding_lookup.1} parent=1 // pred_check
      _
    $region3: #{embedding_lookup.1} parent=1 // pred_check_branch
      %11 = sbr.rel (0) target = $region5
    $region4: #{embedding_lookup.1} parent=1 // pred_region
      %s13 = ssub.s32 16, 16
      %14 = vsyncadd [#allocation5], %s13
      %17 = dma.hbm_to_smem %s0, 16, [#allocation2], [#allocation5]
    $region5: #{embedding_lookup.1} parent=1 // pred_fallthru
      _
    // Predicated region
    $region6: #{embedding_lookup.1} parent=1 // pred_check
      _
    $region7: #{embedding_lookup.1} parent=1 // pred_check_branch
      %19 = sbr.rel (0) target = $region9
    $region8: #{embedding_lookup.1} parent=1 // pred_region
      %s21 = ssub.s32 128, 128
      %22 = vsyncadd [#allocation3], %s21
      %s24 = sshll.u32 [#allocation6], 4
      %s25 = int_to_ptr.vmem [resolvable:$true] %s24
      %27 = dma.hbm_to_vmem [thread:$0]  %s1, 128, %s25, [#allocation3]
    $region9: #{embedding_lookup.1} parent=1 // pred_fallthru
      _
    // Predicated region
    $region10: #{embedding_lookup.1} parent=1 // pred_check
      _
    $region11: #{embedding_lookup.1} parent=1 // pred_check_branch
      %29 = sbr.rel (0) target = $region13
    $region12: #{embedding_lookup.1} parent=1 // pred_region
      %30 = dma.done [#allocation5], 16
    $region13: #{embedding_lookup.1} parent=1 // pred_fallthru
      _
    // Predicated region
    $region14: #{embedding_lookup.1} parent=1 // pred_check
      _
    $region15: #{embedding_lookup.1} parent=1 // pred_check_branch
      %32 = sbr.rel (0) target = $region17
    $region16: #{embedding_lookup.1} parent=1 // pred_region
      %33 = dma.done [#allocation3], 128
    $region17: #{embedding_lookup.1} parent=1 // pred_fallthru
      _
    %34 = sfence
    %s35 = sld [smem:[#allocation2]]
    %p36 = scmp.gt.s32.totalorder %s35, 0
    %s37 = scalar_select %p36, %s35, 0
    %p38 = scmp.lt.s32.totalorder %s37, 7
    %s39 = scalar_select %p38, %s37, 7
    %s40 = scalar_lea.vmem [#allocation6], %s39
    %v41 = vld [vmem:[%s40] sm:$0x1]
    %vm42 = vcmask 253952
    %43 = vst.msk [vmem:[#allocation7] sm:$0x1] %vm42, %v41
    %s44 = sld [smem:[#allocation2 + $0x1]]
    %p45 = scmp.gt.s32.totalorder %s44, 0
    %s46 = scalar_select %p45, %s44, 0
    %p47 = scmp.lt.s32.totalorder %s46, 7
    %s48 = scalar_select %p47, %s46, 7
    %s49 = scalar_lea.vmem [#allocation6], %s48
    %v50 = vld [vmem:[%s49] sm:$0x1]
    %51 = vst.msk [vmem:[#allocation7 + $0x1] sm:$0x1] %vm42, %v50
    // Predicated region
    $region18: #{embedding_lookup.1} parent=1 // pred_check
      _
    $region19: #{embedding_lookup.1} parent=1 // pred_check_branch
      %53 = sbr.rel (0) target = $region21
    $region20: #{embedding_lookup.1} parent=1 // pred_region
      %s55 = ssub.s32 32, 32
      %56 = vsyncadd [#allocation4], %s55
      %s58 = sshll.u32 [#allocation7], 4
      %s59 = int_to_ptr.vmem [resolvable:$true] %s58
      %61 = dma.vmem_to_hbm [thread:$0]  %s59, 32, %s2, [#allocation4]
    $region21: #{embedding_lookup.1} parent=1 // pred_fallthru
      _
    // Predicated region
    $region22: #{embedding_lookup.1} parent=1 // pred_check
      _
    $region23: #{embedding_lookup.1} parent=1 // pred_check_branch
      %63 = sbr.rel (0) target = $region25
    $region24: #{embedding_lookup.1} parent=1 // pred_region
      %64 = dma.done [#allocation4], 32
    $region25: #{embedding_lookup.1} parent=1 // pred_fallthru
      _
    %65 = vsyncpa [#allocation3], 1
    %66 = vsyncpa [#allocation4], 1
    %67 = vsyncpa [#allocation5], 1

</llo_original>
